<compile_context>
chip_gen: v5e
topology: v5e:2x2
jax: 0.10.0
libtpu: 0.0.40
codegen_flags: <defaults>
</compile_context>

<pallas_src>
import jax
import jax.numpy as jnp
from jax.experimental import pallas as pl
from jax.experimental.pallas import tpu as pltpu


def _patch_add_kernel(x_ref, prompt_ref, o_ref):
    # x_ref / o_ref : (bn, C, Pr, W) tile of x (in/out alias the same HBM).
    # prompt_ref    : (1,  C, Pr, W) f32 prompt rows (same block every step).
    o_ref[...] = (x_ref[...].astype(jnp.float32) + prompt_ref[...]).astype(o_ref.dtype)


def fixed_patch_prompter(x, patch):
    """x: (N, C, H, W), patch: (1, C, P, P) -> x + zero-padded patch.

    The output aliases x; donate x (jit donate_argnums=(0,)) to get the
    in-place, patch-rows-only fast path.
    """
    N, C, H, W = x.shape
    _, Cp, P, P2 = patch.shape
    assert Cp == C and P == P2 and P <= H and P <= W

    itemsize = jnp.dtype(x.dtype).itemsize
    # Sublane multiple for the second-to-last block dim: 8 (f32), 16 (bf16), 32 (int8/fp8).
    sub = max(8, 32 // max(1, itemsize))
    Pr = H if P >= H else min(H, ((P + sub - 1) // sub) * sub)

    # Prompt rows, zero padded to (1, C, Pr, W), kept in f32 (parameter dtype).
    prompt = jnp.zeros((1, C, Pr, W), dtype=jnp.float32)
    prompt = prompt.at[:, :, :P, :P].set(patch.astype(jnp.float32))

    # ---- generation-aware tile / VMEM budgets ------------------------------
    try:
        vmem_cap = int(pltpu.get_tpu_info().vmem_capacity_bytes)
    except Exception:
        vmem_cap = 64 * 1024 * 1024  # conservative fallback (v7x per-TC VMEM)
    # ~24 MiB of tile budget on v7x (64 MiB VMEM), ~48 MiB on v5e/v6e (128 MiB).
    tile_budget = max(4 << 20, min(48 << 20, (vmem_cap * 3) // 8))

    per_image_bytes = C * Pr * W * itemsize        # one copy of one image's patch rows
    # 4 copies of the x tile live at once (double-buffered input + output).
    bn_budget = max(1, tile_budget // (4 * per_image_bytes))
    # Keep >= 2 grid steps (when N >= 2) so both v7x TensorCores get work.
    bn = max(1, min(bn_budget, pl.cdiv(N, 2)))
    grid_n = pl.cdiv(N, bn)
    # TODO(synk): if a single image's patch rows ever exceed the tile budget
    # (pathologically wide images), add a second grid axis tiling W.

    prompt_bytes = C * Pr * W * 4
    footprint = 4 * bn * per_image_bytes + 2 * prompt_bytes
    vmem_limit = int(min(max(footprint + (8 << 20), 32 << 20),
                         max(vmem_cap - (16 << 20), 32 << 20)))

    block = (bn, C, Pr, W)
    out = pl.pallas_call(
        _patch_add_kernel,
        out_shape=jax.ShapeDtypeStruct((N, C, H, W), x.dtype),
        grid_spec=pltpu.PrefetchScalarGridSpec(
            num_scalar_prefetch=0,
            grid=(grid_n,),
            in_specs=[
                pl.BlockSpec(block, lambda i: (i, 0, 0, 0)),          # x patch rows
                pl.BlockSpec((1, C, Pr, W), lambda i: (0, 0, 0, 0)),  # prompt, reused
            ],
            out_specs=pl.BlockSpec(block, lambda i: (i, 0, 0, 0)),
        ),
        input_output_aliases={0: 0},   # output aliases x: untouched rows stay put
        compiler_params=pltpu.CompilerParams(
            dimension_semantics=("parallel",),     # shards grid across TCs on v7x
            vmem_limit_bytes=vmem_limit,
        ),
    )(x, prompt)
    return out


if __name__ == "__main__":
    # Small shapes consistent with the module: 3 channels, image_size=16,
    # visual_prompt_size=4.
    N, C, H, W = 2, 3, 16, 16
    P = 4

    key = jax.random.PRNGKey(0)
    kx, kp = jax.random.split(key)

    x = jax.random.normal(kx, (N, C, H, W), dtype=jnp.float32)
    # Deterministic stand-in for nn.Parameter(torch.randn([1, 3, P, P])).
    patch = jax.random.normal(kp, (1, C, P, P), dtype=jnp.float32)

    # Pure-JAX reference computed BEFORE the kernel call (x is donated).
    prompt_full = jnp.zeros((1, C, H, W), dtype=jnp.float32)
    prompt_full = prompt_full.at[:, :, :P, :P].set(patch)
    ref = jax.block_until_ready(x + prompt_full)

    fwd = jax.jit(fixed_patch_prompter, donate_argnums=(0,))
    out = jax.block_until_ready(fwd(x, patch))

    assert out.shape == (N, C, H, W)
    assert jnp.allclose(out, ref, atol=1e-6), "mismatch vs reference"

    print("KERNEL_OK")
</pallas_src>

<mosaic_0001>
module attributes {stable_mosaic.version = 11 : i64} {
  func.func @_patch_add_kernel(%arg0: i32, %arg1: memref<1x3x8x16xf32, #tpu.memory_space<vmem>>, %arg2: memref<1x3x8x16xf32, #tpu.memory_space<vmem>>, %arg3: memref<1x3x8x16xf32, #tpu.memory_space<vmem>>) attributes {dimension_semantics = [#tpu.dimension_semantics<parallel>], iteration_bounds = array<i64: 2>, scalar_prefetch = 0 : i64, scratch_operands = 0 : i64, tpu.core_type = #tpu.core_type<tc>, window_params = [{transform_indices = @transform_0, window_bounds = array<i64: 1, 3, 8, 16>}, {pipeline_mode = #tpu.pipeline_mode<synchronous>, transform_indices = @transform_1, window_bounds = array<i64: 1, 3, 8, 16>}, {transform_indices = @transform_2, window_bounds = array<i64: 1, 3, 8, 16>}]} {
    %c0 = arith.constant 0 : index
    %c0_0 = arith.constant 0 : index
    %c0_1 = arith.constant 0 : index
    %c0_2 = arith.constant 0 : index
    %0 = vector.load %arg1[%c0, %c0_0, %c0_1, %c0_2] : memref<1x3x8x16xf32, #tpu.memory_space<vmem>>, vector<1x3x8x16xf32>
    %c0_3 = arith.constant 0 : index
    %c0_4 = arith.constant 0 : index
    %c0_5 = arith.constant 0 : index
    %c0_6 = arith.constant 0 : index
    %1 = vector.load %arg2[%c0_3, %c0_4, %c0_5, %c0_6] : memref<1x3x8x16xf32, #tpu.memory_space<vmem>>, vector<1x3x8x16xf32>
    %2 = arith.addf %0, %1 : vector<1x3x8x16xf32>
    %c0_7 = arith.constant 0 : index
    %c0_8 = arith.constant 0 : index
    %c0_9 = arith.constant 0 : index
    %c0_10 = arith.constant 0 : index
    %3 = vector.load %arg3[%c0_7, %c0_8, %c0_9, %c0_10] : memref<1x3x8x16xf32, #tpu.memory_space<vmem>>, vector<1x3x8x16xf32>
    tpu.vector_store %arg3[%c0_7, %c0_8, %c0_9, %c0_10], %2 {strides = array<i32>} : memref<1x3x8x16xf32, #tpu.memory_space<vmem>>, vector<1x3x8x16xf32>,
    return
  }
  func.func @transform_0(%arg0: i32) -> (i32, i32, i32, i32) {
    %c0_i32 = arith.constant 0 : i32
    %c0_i32_0 = arith.constant 0 : i32
    %c0_i32_1 = arith.constant 0 : i32
    %c0_i32_2 = arith.constant 0 : i32
    return %arg0, %c0_i32, %c0_i32_0, %c0_i32_1 : i32, i32, i32, i32
  }
  func.func @transform_1(%arg0: i32) -> (i32, i32, i32, i32) {
    %c0_i32 = arith.constant 0 : i32
    %c0_i32_0 = arith.constant 0 : i32
    %c0_i32_1 = arith.constant 0 : i32
    %c0_i32_2 = arith.constant 0 : i32
    %c0_i32_3 = arith.constant 0 : i32
    return %c0_i32, %c0_i32_0, %c0_i32_1, %c0_i32_2 : i32, i32, i32, i32
  }
  func.func @transform_2(%arg0: i32) -> (i32, i32, i32, i32) {
    %c0_i32 = arith.constant 0 : i32
    %c0_i32_0 = arith.constant 0 : i32
    %c0_i32_1 = arith.constant 0 : i32
    %c0_i32_2 = arith.constant 0 : i32
    return %arg0, %c0_i32, %c0_i32_0, %c0_i32_1 : i32, i32, i32, i32
  }
}

</mosaic_0001>

<llo_original>
// kernel: fixed_patch_prompter.1
$region0: #{fixed_patch_prompter.1}
  #allocation0 [shape = 'u32[]', space=smem, size = 0x4, offset = 0x4, fixed_abs, tag = 'smem constant byte address 0x4 - core index']
  #allocation1 [shape = 'u32[72,128]{1,0:T(1,128)}', space=vmem, size = 0x9000, scoped, tag = 'internal scratch']
  %s0 = inlined_call_operand.hbm [shape: f32[2,3,16,16], index: 0, kind: input, shape index: {}, may-alias: {0,2}]
  %s1 = inlined_call_operand.vmem [shape: f32[1,3,8,16], index: 1, kind: input, shape index: {}]
  %s2 = inlined_call_operand.hbm [shape: f32[2,3,16,16], index: 2, kind: output, shape index: {}, may-alias: {0,2}]
  %s3 = sld [smem:[#allocation0]]
  $region45: #{fixed_patch_prompter.1} parent=0
    _
  %s5 = ssub.s32 1, %s3
  %s6 = scalar_select 0, %s5, %s3
  $region1: #{fixed_patch_prompter.1} parent=0
    #allocation2 [shape = 'u8[24576]{0}', space=vmem, size = 0x6000, scoped, tag = 'input window, operand 0']
    #allocation3 [shape = 's32[2]{0}', space=sflag, size = 0x8, scoped, tag = 'scoped memory for fixed_patch_prompter.1']
    #allocation4 [shape = 's32[2]{0}', space=sflag, size = 0x8, scoped, tag = 'scoped memory for fixed_patch_prompter.1']
    #allocation5 [shape = 'u8[24576]{0}', space=vmem, size = 0x6000, scoped, tag = 'output window, operand 0']
    %7 = vsyncpa [#allocation3], 0
    %s8 = scalar_lea.sflag [#allocation3], 1
    %9 = vsyncpa %s8, 0
    %10 = vsyncpa [#allocation4], 0
    %s11 = scalar_lea.sflag [#allocation4], 1
    %12 = vsyncpa %s11, 0
    loop: start=0, step=1, limit=4
    $region2: #{fixed_patch_prompter.1} parent=1 // loop_pre_header
      _
    $region3: #{fixed_patch_prompter.1} parent=1 // loop_header
      %s14 = sphi 0, %s18
      %p15 = scmp.ge.s32.totalorder %s14, 4
      %s24 = sphi 0, %s26
      %s27 = sphi 0, %s24
      %s28 = sphi 0, %s27
      %s44 = sphi 0, %s28
      %s48 = sphi 0, %s48
      %s50 = sphi 0, %s48
      %s51 = sphi 0, %s50
      %s65 = sphi 0, %s51
      %s71 = sphi 0, %s73
      %s74 = sphi 0, %s71
      %s75 = sphi 0, %s74
      %s91 = sphi 0, %s75
    $region4: #{fixed_patch_prompter.1} parent=1 // loop_header_branch
      %17 = sbr.rel (%p15) target = $region8
    $region5: #{fixed_patch_prompter.1} parent=1 // loop_body
      %s19 = ssub.s32 %s14, 1
      %s20 = ssub.s32 %s14, 2
      %s21 = sadd.s32 %s14, 1
      %s22 = ssub.s32 %s14, %s21
      %p23 = scmp.eq.s32.totalorder %s22, 0
      %s25 = sadd.s32 %s24, 1
      %s26 = scalar_select %p23, %s24, %s25
      %p29 = pneg %p23
      %p30 = scmp.eq.s32.totalorder %s14, 1
      %p31 = por %p29, %p30
      %p32 = scmp.ne.s32.totalorder %s24, %s27
      %p33 = scmp.eq.s32.totalorder %s14, 0
      %p34 = por %p32, %p33
      %p35 = scmp.ne.s32.totalorder %s24, %s27
      %p36 = scmp.eq.s32.totalorder %s19, 1
      %p37 = por %p35, %p36
      %p38 = scmp.ne.s32.totalorder %s27, %s28
      %p39 = scmp.eq.s32.totalorder %s19, 0
      %p40 = por %p38, %p39
      %p41 = scmp.ne.s32.totalorder %s27, %s28
      %p42 = scmp.eq.s32.totalorder %s20, 1
      %p43 = por %p41, %p42
      %p45 = scmp.ne.s32.totalorder %s28, %s44
      %p46 = scmp.eq.s32.totalorder %s20, 0
      %p47 = por %p45, %p46
      %s49 = sadd.s32 %s48, 1
      %p52 = scmp.eq.s32.totalorder %s14, 1
      %p53 = scmp.ne.s32.totalorder %s48, %s50
      %p54 = scmp.eq.s32.totalorder %s14, 0
      %p55 = por %p53, %p54
      %p56 = scmp.ne.s32.totalorder %s48, %s50
      %p57 = scmp.eq.s32.totalorder %s19, 1
      %p58 = por %p56, %p57
      %p59 = scmp.ne.s32.totalorder %s50, %s51
      %p60 = scmp.eq.s32.totalorder %s19, 0
      %p61 = por %p59, %p60
      %p62 = scmp.ne.s32.totalorder %s50, %s51
      %p63 = scmp.eq.s32.totalorder %s20, 1
      %p64 = por %p62, %p63
      %p66 = scmp.ne.s32.totalorder %s51, %s65
      %p67 = scmp.eq.s32.totalorder %s20, 0
      %p68 = por %p66, %p67
      %s69 = ssub.s32 %s14, %s21
      %p70 = scmp.eq.s32.totalorder %s69, 0
      %s72 = sadd.s32 %s71, 1
      %s73 = scalar_select %p70, %s71, %s72
      %p76 = pneg %p70
      %p77 = scmp.eq.s32.totalorder %s14, 1
      %p78 = por %p76, %p77
      %p79 = scmp.ne.s32.totalorder %s71, %s74
      %p80 = scmp.eq.s32.totalorder %s14, 0
      %p81 = por %p79, %p80
      %p82 = scmp.ne.s32.totalorder %s71, %s74
      %p83 = scmp.eq.s32.totalorder %s19, 1
      %p84 = por %p82, %p83
      %p85 = scmp.ne.s32.totalorder %s74, %s75
      %p86 = scmp.eq.s32.totalorder %s19, 0
      %p87 = por %p85, %p86
      %p88 = scmp.ne.s32.totalorder %s74, %s75
      %p89 = scmp.eq.s32.totalorder %s20, 1
      %p90 = por %p88, %p89
      %p92 = scmp.ne.s32.totalorder %s75, %s91
      %p93 = scmp.eq.s32.totalorder %s20, 0
      %p94 = por %p92, %p93
      %p95 = scmp.le.s32.totalorder 1, %s14
      %p96 = scmp.lt.s32.totalorder %s14, 3
      %p97 = pnand %p95, %p96
      %p98 = pneg %p97
      // Predicated region
      $region9: #{fixed_patch_prompter.1} parent=5 // pred_check
        _
      $region10: #{fixed_patch_prompter.1} parent=5 // pred_check_branch
        %100 = sbr.rel (%p97) target = $region12
      $region11: #{fixed_patch_prompter.1} parent=5 // pred_region
        %s101 = ssub.s32 %s14, 1
        // Predicated region
        $region13: #{fixed_patch_prompter.1} parent=11 // pred_check
          %p102 = pneg %p61
        $region14: #{fixed_patch_prompter.1} parent=11 // pred_check_branch
          %104 = sbr.rel (%p102) target = $region16
        $region15: #{fixed_patch_prompter.1} parent=11 // pred_region
          _
        $region16: #{fixed_patch_prompter.1} parent=11 // pred_fallthru
          _
      $region12: #{fixed_patch_prompter.1} parent=5 // pred_fallthru
        _
      %p105 = scmp.lt.s32.totalorder %s14, 2
      // Predicated region
      $region17: #{fixed_patch_prompter.1} parent=5 // pred_check
        %p106 = pneg %p105
      $region18: #{fixed_patch_prompter.1} parent=5 // pred_check_branch
        %108 = sbr.rel (%p106) target = $region20
      $region19: #{fixed_patch_prompter.1} parent=5 // pred_region
        // Predicated region
        $region21: #{fixed_patch_prompter.1} parent=19 // pred_check
          %p109 = pneg %p34
        $region22: #{fixed_patch_prompter.1} parent=19 // pred_check_branch
          %111 = sbr.rel (%p109) target = $region24
        $region23: #{fixed_patch_prompter.1} parent=19 // pred_region
          %s112 = sand.u32 %s24, 1
          %s113 = scalar_lea.sflag [#allocation3], %s112
          %s114 = sand.u32 %s24, 1
          %s115 = smul.addr %s114, 24
          %s116 = scalar_lea.vmem [#allocation2], %s115
          %118 = vsyncadd %s113, 0
          %s119 = smul.addr %s14, 6
          %s120 = smul.addr %s119, 8
          %s121 = scalar_lea.hbm %s0, %s120
          %s122 = sshll.u32 %s121, 4
          %s123 = int_to_ptr.hbm [resolvable:$true] %s122
          %s124 = sshll.u32 %s116, 4
          %s125 = int_to_ptr.vmem [resolvable:$true] %s124
          %130 = dma.hbm_to_vmem [thread:$0]  %s123, 384, %s125, %s113, 256, 128, 8
        $region24: #{fixed_patch_prompter.1} parent=19 // pred_fallthru
          _
      $region20: #{fixed_patch_prompter.1} parent=5 // pred_fallthru
        _
      %p131 = scmp.le.s32.totalorder 1, %s14
      %p132 = scmp.lt.s32.totalorder %s14, 3
      %p133 = pnand %p131, %p132
      %p134 = pneg %p133
      // Predicated region
      $region25: #{fixed_patch_prompter.1} parent=5 // pred_check
        _
      $region26: #{fixed_patch_prompter.1} parent=5 // pred_check_branch
        %136 = sbr.rel (%p133) target = $region28
      $region27: #{fixed_patch_prompter.1} parent=5 // pred_region
        %s137 = ssub.s32 %s14, 1
        %s138 = sand.u32 %s27, 1
        %s139 = scalar_lea.sflag [#allocation3], %s138
        %s140 = sand.u32 %s27, 1
        %s141 = smul.addr %s140, 24
        %s142 = scalar_lea.vmem [#allocation2], %s141
        // Predicated region
        $region29: #{fixed_patch_prompter.1} parent=27 // pred_check
          %p143 = pneg %p40
        $region30: #{fixed_patch_prompter.1} parent=27 // pred_check_branch
          %145 = sbr.rel (%p143) target = $region32
        $region31: #{fixed_patch_prompter.1} parent=27 // pred_region
          %147 = dma.done %s139, 384
        $region32: #{fixed_patch_prompter.1} parent=27 // pred_fallthru
          _
        %s148 = sand.u32 %s27, 1
        %s149 = scalar_lea.sflag [#allocation3], %s148
        %s150 = sand.u32 %s27, 1
        %s151 = smul.addr %s150, 24
        %s152 = scalar_lea.vmem [#allocation2], %s151
        %p153 = pneg %p40
        %p154 = pneg %p37
        %p155 = pneg %p61
        %p156 = pneg %p58
        %p157 = pneg %p87
        %p158 = pneg %p84
        %s159 = sand.u32 %s74, 1
        %s160 = scalar_lea.sflag [#allocation4], %s159
        %s161 = sand.u32 %s74, 1
        %s162 = smul.addr %s161, 24
        %s163 = scalar_lea.vmem [#allocation5], %s162
        %v164 = vld [vmem:[%s142] sm:$0xff]
        %v165 = vld [vmem:[%s142 + $0x8] sm:$0xff]
        %v166 = vld [vmem:[%s142 + $0x10] sm:$0xff]
        %v167 = vld [vmem:[%s1] sm:$0xff]
        %v168 = vld [vmem:[%s1 + $0x8] sm:$0xff]
        %v169 = vld [vmem:[%s1 + $0x10] sm:$0xff]
        %v170 = vadd.f32 %v164, %v167
        %v171 = vadd.f32 %v165, %v168
        %v172 = vadd.f32 %v166, %v169
        %vm173 = vcmask 130048
        %174 = vst.msk [vmem:[%s163] sm:$0xff] %vm173, %v170
        %175 = vst.msk [vmem:[%s163 + $0x8] sm:$0xff] %vm173, %v171
        %176 = vst.msk [vmem:[%s163 + $0x10] sm:$0xff] %vm173, %v172
        %s177 = sand.u32 %s74, 1
        %s178 = scalar_lea.sflag [#allocation4], %s177
        %s179 = sand.u32 %s74, 1
        %s180 = smul.addr %s179, 24
        %s181 = scalar_lea.vmem [#allocation5], %s180
        // Predicated region
        $region33: #{fixed_patch_prompter.1} parent=27 // pred_check
          %p182 = pneg %p84
        $region34: #{fixed_patch_prompter.1} parent=27 // pred_check_branch
          %184 = sbr.rel (%p182) target = $region36
        $region35: #{fixed_patch_prompter.1} parent=27 // pred_region
          %186 = vsyncadd %s178, 0
          %s187 = smul.addr %s19, 6
          %s188 = smul.addr %s187, 8
          %s189 = scalar_lea.hbm %s2, %s188
          %s190 = sshll.u32 %s181, 4
          %s191 = int_to_ptr.vmem [resolvable:$true] %s190
          %s192 = sshll.u32 %s189, 4
          %s193 = int_to_ptr.hbm [resolvable:$true] %s192
          %198 = dma.vmem_to_hbm [thread:$0]  %s191, 384, %s193, %s178, 128, 256, 8
        $region36: #{fixed_patch_prompter.1} parent=27 // pred_fallthru
          _
      $region28: #{fixed_patch_prompter.1} parent=5 // pred_fallthru
        _
      %p199 = scmp.le.s32.totalorder 2, %s14
      // Predicated region
      $region37: #{fixed_patch_prompter.1} parent=5 // pred_check
        %p200 = pneg %p199
      $region38: #{fixed_patch_prompter.1} parent=5 // pred_check_branch
        %202 = sbr.rel (%p200) target = $region40
      $region39: #{fixed_patch_prompter.1} parent=5 // pred_region
        %s203 = ssub.s32 %s14, 2
        // Predicated region
        $region41: #{fixed_patch_prompter.1} parent=39 // pred_check
          %p204 = pneg %p90
        $region42: #{fixed_patch_prompter.1} parent=39 // pred_check_branch
          %206 = sbr.rel (%p204) target = $region44
        $region43: #{fixed_patch_prompter.1} parent=39 // pred_region
          %s207 = sand.u32 %s75, 1
          %s208 = scalar_lea.sflag [#allocation4], %s207
          %s209 = sand.u32 %s75, 1
          %s210 = smul.addr %s209, 24
          %s211 = scalar_lea.vmem [#allocation5], %s210
          %213 = dma.done %s208, 384
        $region44: #{fixed_patch_prompter.1} parent=39 // pred_fallthru
          _
      $region40: #{fixed_patch_prompter.1} parent=5 // pred_fallthru
        _
    $region6: #{fixed_patch_prompter.1} parent=1 // loop_footer
      %s18 = sadd.s32 1, %s14
    $region7: #{fixed_patch_prompter.1} parent=1 // loop_footer_branch
      %13 = sbr.rel target = $region3
    $region8: #{fixed_patch_prompter.1} parent=1 // loop_exit
      _
    %214 = vsyncpa [#allocation3], 1
    %s215 = scalar_lea.sflag [#allocation3], 1
    %216 = vsyncpa %s215, 1
    %217 = vsyncpa [#allocation4], 1
    %s218 = scalar_lea.sflag [#allocation4], 1
    %219 = vsyncpa %s218, 1

</llo_original>
